<compile_context>
chip_gen: v7x
topology: tpu7x:2x2x1
jax: 0.10.0
libtpu: 0.0.40
codegen_flags: <defaults>
</compile_context>

<pallas_src>
import jax
import jax.numpy as jnp
from jax.experimental import pallas as pl
from jax.experimental.pallas import tpu as pltpu

_LANES = 1024                      # 8 sublanes x 128 lanes for f32 (lane-dense last dim)
_TARGET_TILE_BYTES = 4 << 20       # ~4 MiB per buffer per grid step
_VMEM_LIMIT_BYTES = 32 << 20       # 3 operands x 2 bufs x 4 MiB = 24 MiB fits
_SINGLE_BLOCK_MAX_BYTES = 2 << 20  # small-ragged whole-array-as-one-block cap
_PALLAS_MIN_BYTES = 1 << 20        # below this a plain fused XLA add wins


def _add_kernel(a_ref, b_ref, o_ref):
    # Elementwise VPU add on the current VMEM tile.
    o_ref[...] = a_ref[...] + b_ref[...]


def _row_alignment(dtype) -> int:
    # Packed-sublane row multiple: 8 for 32-bit, 16 for 16-bit, 32 for 8-bit dtypes.
    return 8 * max(1, 4 // jnp.dtype(dtype).itemsize)


def _choose_block_rows(rows: int, lanes: int, dtype) -> int:
    """Pick a sublane-aligned tile height; keep >=2 grid steps when possible."""
    itemsize = jnp.dtype(dtype).itemsize
    align = _row_alignment(dtype)
    target = max(align, (_TARGET_TILE_BYTES // (lanes * itemsize)) // align * align)
    if rows <= align:
        return rows                  # single block == full array dims (legal)
    if rows > target:
        return target                # grid automatically >= 2
    # Everything would fit in one block: split into ~2 so both v7x TCs stream.
    half = (rows + 1) // 2
    return min(rows, ((half + align - 1) // align) * align)


def _pallas_add_2d(a2: jax.Array, b2: jax.Array, block_rows: int) -> jax.Array:
    rows, lanes = a2.shape
    itemsize = jnp.dtype(a2.dtype).itemsize
    spec = pl.BlockSpec((block_rows, lanes), lambda i: (i, 0))
    return pl.pallas_call(
        _add_kernel,
        out_shape=jax.ShapeDtypeStruct((rows, lanes), a2.dtype),
        grid_spec=pltpu.PrefetchScalarGridSpec(
            num_scalar_prefetch=0,
            grid=(pl.cdiv(rows, block_rows),),
            in_specs=[spec, spec],
            out_specs=spec,
        ),
        compiler_params=pltpu.CompilerParams(
            dimension_semantics=("parallel",),
            vmem_limit_bytes=_VMEM_LIMIT_BYTES,
        ),
        cost_estimate=pl.CostEstimate(
            flops=rows * lanes,
            transcendentals=0,
            bytes_accessed=3 * rows * lanes * itemsize,
        ),
    )(a2, b2)


def add_processor(signal_a: jax.Array, signal_b: jax.Array,
                  n_samples: int | None = None, *,
                  use_pallas: bool | None = None) -> jax.Array:
    """Pallas equivalent of Add.forward({'signal_a': a, 'signal_b': b}, n_samples).

    `n_samples` is accepted for API parity but (as in the PyTorch module) unused.
    Both signals must have identical shape and dtype.
    """
    assert signal_a.shape == signal_b.shape, "Add expects equally-shaped signals"
    assert signal_a.dtype == signal_b.dtype, "Add expects matching dtypes"

    orig_shape = signal_a.shape
    dtype = signal_a.dtype
    itemsize = jnp.dtype(dtype).itemsize
    total = int(signal_a.size)
    aligned = total > 0 and (total % _LANES == 0)

    if use_pallas is None:
        # Pallas only wins when it adds no extra HBM passes: large + lane-aligned.
        use_pallas = aligned and total * itemsize >= _PALLAS_MIN_BYTES
    if total == 0 or not use_pallas:
        # Plain fused XLA add (already at the HBM roofline, can fuse with neighbors).
        return signal_a + signal_b

    a = signal_a.reshape(-1)
    b = signal_b.reshape(-1)

    if aligned:
        rows = total // _LANES
        a2 = a.reshape(rows, _LANES)
        b2 = b.reshape(rows, _LANES)
        out = _pallas_add_2d(a2, b2, _choose_block_rows(rows, _LANES, dtype)).reshape(-1)
    elif total * itemsize <= _SINGLE_BLOCK_MAX_BYTES:
        # Small ragged total (forced Pallas): one full-array block, no pad/slice.
        out = _pallas_add_2d(a.reshape(1, total), b.reshape(1, total), 1).reshape(-1)
    else:
        # Large ragged total (forced Pallas): Pallas on the 1024-aligned prefix,
        # plain XLA add on the short tail — avoids padding both full inputs.
        split = (total // _LANES) * _LANES
        rows = split // _LANES
        head = _pallas_add_2d(a[:split].reshape(rows, _LANES),
                              b[:split].reshape(rows, _LANES),
                              _choose_block_rows(rows, _LANES, dtype)).reshape(-1)
        tail = a[split:] + b[split:]
        out = jnp.concatenate([head, tail])

    return out.reshape(orig_shape)


if __name__ == "__main__":
    # Deterministic synthetic "audio" signals in [-1, 1], matching the
    # processor's param_range for signal_a / signal_b.
    key = jax.random.PRNGKey(0)
    ka, kb, kc, kd = jax.random.split(key, 4)

    # Small, ragged (not 1024-aligned) shape — exercises the single-block path.
    batch, n_samples = 2, 256
    signal_a = jax.random.uniform(ka, (batch, n_samples), jnp.float32, -1.0, 1.0)
    signal_b = jax.random.uniform(kb, (batch, n_samples), jnp.float32, -1.0, 1.0)

    out = add_processor(signal_a, signal_b, n_samples, use_pallas=True)
    out = jax.block_until_ready(out)
    ref = signal_a + signal_b
    assert out.shape == ref.shape and out.dtype == ref.dtype
    assert jnp.allclose(out, ref, atol=1e-6, rtol=1e-6)

    # 1024-aligned shape — exercises the tiled (rows, 1024) main path (grid >= 2).
    big_a = jax.random.uniform(kc, (4, 4096), jnp.float32, -1.0, 1.0)
    big_b = jax.random.uniform(kd, (4, 4096), jnp.float32, -1.0, 1.0)
    out_big = jax.block_until_ready(add_processor(big_a, big_b, 4096, use_pallas=True))
    assert jnp.allclose(out_big, big_a + big_b, atol=1e-6, rtol=1e-6)

    # Auto-fallback (tiny / ragged input -> plain fused XLA add).
    out_xla = jax.block_until_ready(add_processor(signal_a, signal_b, n_samples))
    assert jnp.allclose(out_xla, ref, atol=1e-6, rtol=1e-6)

    print("KERNEL_OK")
</pallas_src>

<mosaic_0001>
module attributes {stable_mosaic.version = 11 : i64} {
  func.func @_add_kernel(%arg0: i32, %arg1: memref<1x512xf32, #tpu.memory_space<vmem>>, %arg2: memref<1x512xf32, #tpu.memory_space<vmem>>, %arg3: memref<1x512xf32, #tpu.memory_space<vmem>>) attributes {dimension_semantics = [#tpu.dimension_semantics<parallel>], iteration_bounds = array<i64: 1>, scalar_prefetch = 0 : i64, scratch_operands = 0 : i64, tpu.core_type = #tpu.core_type<tc>, window_params = [{transform_indices = @transform_0, window_bounds = array<i64: 1, 512>}, {transform_indices = @transform_1, window_bounds = array<i64: 1, 512>}, {transform_indices = @transform_2, window_bounds = array<i64: 1, 512>}]} {
    %c0 = arith.constant 0 : index
    %c0_0 = arith.constant 0 : index
    %0 = vector.load %arg1[%c0, %c0_0] : memref<1x512xf32, #tpu.memory_space<vmem>>, vector<1x512xf32>
    %c0_1 = arith.constant 0 : index
    %c0_2 = arith.constant 0 : index
    %1 = vector.load %arg2[%c0_1, %c0_2] : memref<1x512xf32, #tpu.memory_space<vmem>>, vector<1x512xf32>
    %2 = arith.addf %0, %1 : vector<1x512xf32>
    %c0_3 = arith.constant 0 : index
    %c0_4 = arith.constant 0 : index
    %3 = vector.load %arg3[%c0_3, %c0_4] : memref<1x512xf32, #tpu.memory_space<vmem>>, vector<1x512xf32>
    tpu.vector_store %arg3[%c0_3, %c0_4], %2 {strides = array<i32>} : memref<1x512xf32, #tpu.memory_space<vmem>>, vector<1x512xf32>,
    return
  }
  func.func @transform_0(%arg0: i32) -> (i32, i32) {
    %c0_i32 = arith.constant 0 : i32
    %c0_i32_0 = arith.constant 0 : i32
    return %arg0, %c0_i32 : i32, i32
  }
  func.func @transform_1(%arg0: i32) -> (i32, i32) {
    %c0_i32 = arith.constant 0 : i32
    %c0_i32_0 = arith.constant 0 : i32
    return %arg0, %c0_i32 : i32, i32
  }
  func.func @transform_2(%arg0: i32) -> (i32, i32) {
    %c0_i32 = arith.constant 0 : i32
    %c0_i32_0 = arith.constant 0 : i32
    return %arg0, %c0_i32 : i32, i32
  }
}

</mosaic_0001>

<llo_original>
// kernel: tpu_custom_call.1
$region0: #{tpu_custom_call.1}
  #allocation0 [shape = 'u32[]', space=smem, size = 0x4, offset = 0x4, fixed_abs, tag = 'smem constant byte address 0x4 - core index']
  #allocation1 [shape = 'u32[144,128]{1,0:T(1,128)}', space=vmem, size = 0x12000, scoped, tag = 'internal scratch']
  %s0 = inlined_call_operand.hbm [shape: f32[1,512], index: 0, kind: input, shape index: {}]
  %s1 = inlined_call_operand.hbm [shape: f32[1,512], index: 1, kind: input, shape index: {}]
  %s2 = inlined_call_operand.hbm [shape: f32[1,512], index: 2, kind: output, shape index: {}]
  %s3 = sld [smem:[#allocation0]]
  $region26: #{tpu_custom_call.1} parent=0
    _
  %s5 = ssub.s32 1, %s3
  %s6 = scalar_select 0, %s5, %s3
  $region1: #{tpu_custom_call.1} parent=0
    #allocation2 [shape = 'u8[2048]{0}', space=vmem, size = 0x800, scoped, tag = 'input window, operand 0, single buffered']
    #allocation3 [shape = 's32[1]{0}', space=sflag, size = 0x4, scoped, tag = 'scoped memory for tpu_custom_call.1']
    #allocation4 [shape = 's32[1]{0}', space=sflag, size = 0x4, scoped, tag = 'scoped memory for tpu_custom_call.1']
    #allocation5 [shape = 'u8[2048]{0}', space=vmem, size = 0x800, scoped, tag = 'input window, operand 1, single buffered']
    #allocation6 [shape = 's32[1]{0}', space=sflag, size = 0x4, scoped, tag = 'scoped memory for tpu_custom_call.1']
    #allocation7 [shape = 'u8[2048]{0}', space=vmem, size = 0x800, scoped, tag = 'output window, operand 0, single buffered']
    %7 = vsyncpa [#allocation3], 0
    %8 = vsyncpa [#allocation6], 0
    %9 = vsyncpa [#allocation4], 0
    // Predicated region
    $region2: #{tpu_custom_call.1} parent=1 // pred_check
      _
    $region3: #{tpu_custom_call.1} parent=1 // pred_check_branch
      %11 = sbr.rel (0) target = $region5
    $region4: #{tpu_custom_call.1} parent=1 // pred_region
      %s13 = ssub.s32 64, 64
      %14 = vsyncadd [#allocation3], %s13
      %s16 = sshll.u32 [#allocation2], 4
      %s17 = int_to_ptr.vmem [resolvable:$true] %s16
      %19 = dma.hbm_to_vmem [thread:$0]  %s0, 64, %s17, [#allocation3]
    $region5: #{tpu_custom_call.1} parent=1 // pred_fallthru
      _
    // Predicated region
    $region6: #{tpu_custom_call.1} parent=1 // pred_check
      _
    $region7: #{tpu_custom_call.1} parent=1 // pred_check_branch
      %21 = sbr.rel (0) target = $region9
    $region8: #{tpu_custom_call.1} parent=1 // pred_region
      %s23 = ssub.s32 64, 64
      %24 = vsyncadd [#allocation6], %s23
      %s26 = sshll.u32 [#allocation5], 4
      %s27 = int_to_ptr.vmem [resolvable:$true] %s26
      %29 = dma.hbm_to_vmem [thread:$0]  %s1, 64, %s27, [#allocation6]
    $region9: #{tpu_custom_call.1} parent=1 // pred_fallthru
      _
    // Predicated region
    $region10: #{tpu_custom_call.1} parent=1 // pred_check
      _
    $region11: #{tpu_custom_call.1} parent=1 // pred_check_branch
      %31 = sbr.rel (0) target = $region13
    $region12: #{tpu_custom_call.1} parent=1 // pred_region
      %32 = dma.done [#allocation3], 64
    $region13: #{tpu_custom_call.1} parent=1 // pred_fallthru
      _
    // Predicated region
    $region14: #{tpu_custom_call.1} parent=1 // pred_check
      _
    $region15: #{tpu_custom_call.1} parent=1 // pred_check_branch
      %34 = sbr.rel (0) target = $region17
    $region16: #{tpu_custom_call.1} parent=1 // pred_region
      %35 = dma.done [#allocation6], 64
    $region17: #{tpu_custom_call.1} parent=1 // pred_fallthru
      _
    %v36 = vld [vmem:[#allocation2] sm:$0xf]
    %v37 = vld [vmem:[#allocation5] sm:$0xf]
    %v38 = vadd.f32 %v36, %v37
    %v39 = vlaneseq
    %vm40 = vcmp.ge.s32.totalorder %v39, 0
    %vm41 = vcmp.lt.s32.totalorder %v39, 512
    %vm42 = vmand %vm40, %vm41
    %43 = vst.msk [vmem:[#allocation7] sm:$0xf] %vm42, %v38
    // Predicated region
    $region18: #{tpu_custom_call.1} parent=1 // pred_check
      _
    $region19: #{tpu_custom_call.1} parent=1 // pred_check_branch
      %45 = sbr.rel (0) target = $region21
    $region20: #{tpu_custom_call.1} parent=1 // pred_region
      %s47 = ssub.s32 64, 64
      %48 = vsyncadd [#allocation4], %s47
      %s50 = sshll.u32 [#allocation7], 4
      %s51 = int_to_ptr.vmem [resolvable:$true] %s50
      %53 = dma.vmem_to_hbm [thread:$0]  %s51, 64, %s2, [#allocation4]
    $region21: #{tpu_custom_call.1} parent=1 // pred_fallthru
      _
    // Predicated region
    $region22: #{tpu_custom_call.1} parent=1 // pred_check
      _
    $region23: #{tpu_custom_call.1} parent=1 // pred_check_branch
      %55 = sbr.rel (0) target = $region25
    $region24: #{tpu_custom_call.1} parent=1 // pred_region
      %56 = dma.done [#allocation4], 64
    $region25: #{tpu_custom_call.1} parent=1 // pred_fallthru
      _
    %57 = vsyncpa [#allocation3], 1
    %58 = vsyncpa [#allocation6], 1
    %59 = vsyncpa [#allocation4], 1

</llo_original>
